<compile_context>
chip_gen: v5e
topology: v5e:2x2
jax: 0.10.0
libtpu: 0.0.40
codegen_flags: <defaults>
</compile_context>

<pallas_src>
import functools
import math

import jax
import jax.numpy as jnp
from jax.experimental import pallas as pl
from jax.experimental.pallas import tpu as pltpu

BN_EPS = 1e-5
_INV_SQRT2 = 0.7071067811865476
_TANH_GELU_C = math.sqrt(2.0 / math.pi)


def _round_up(x, m):
    return (x + m - 1) // m * m


def _divisor_tile(dim_pad, unit, cap):
    """Largest t = unit*d such that d divides dim_pad//unit and t <= cap (t >= unit)."""
    q = dim_pad // unit
    cap_d = max(1, cap // unit)
    best = 1
    d = 1
    while d * d <= q:
        if q % d == 0:
            for cand in (d, q // d):
                if cand <= cap_d and cand > best:
                    best = cand
        d += 1
    return unit * best


def _vmem_capacity_bytes():
    try:
        info = pltpu.get_tpu_info()
        cap = getattr(info, "vmem_capacity_bytes", None)
        if cap:
            return int(cap)
    except Exception:
        pass
    return 128 * 1024 * 1024  # v5e/v6e default


def _gelu(y, approximate):
    if approximate:
        # tanh approximation: single EUP tanh + a few VALU ops (v5e-friendly).
        return 0.5 * y * (1.0 + jnp.tanh(_TANH_GELU_C * (y + 0.044715 * y * y * y)))
    return 0.5 * y * (1.0 + jax.lax.erf(y * _INV_SQRT2))


def _mlp_kernel_f32out(x_ref, w_ref, shift_ref, o_ref, *, approximate):
    """f32 output: accumulate directly into the VMEM-resident output block."""
    k = pl.program_id(2)

    @pl.when(k == 0)
    def _():
        o_ref[...] = jnp.zeros_like(o_ref)

    # Linear (BN scale + bias already folded into W / shift): MXU, f32 accumulate.
    o_ref[...] += jnp.dot(x_ref[...].astype(w_ref.dtype), w_ref[...],
                          preferred_element_type=jnp.float32)

    @pl.when(k == pl.num_programs(2) - 1)
    def _():
        y = o_ref[...] + shift_ref[...]
        o_ref[...] = _gelu(y, approximate)


def _mlp_kernel_acc(x_ref, w_ref, shift_ref, o_ref, acc_ref, *, approximate):
    """Narrow (e.g. bf16) output: f32 accumulator scratch, single downcast at store."""
    k = pl.program_id(2)

    @pl.when(k == 0)
    def _():
        acc_ref[...] = jnp.zeros_like(acc_ref)

    acc_ref[...] += jnp.dot(x_ref[...].astype(w_ref.dtype), w_ref[...],
                            preferred_element_type=jnp.float32)

    @pl.when(k == pl.num_programs(2) - 1)
    def _():
        y = acc_ref[...] + shift_ref[...]
        o_ref[...] = _gelu(y, approximate).astype(o_ref.dtype)


def fold_mlp_params(w, b, gamma, beta, running_mean, running_var,
                    *, eps=BN_EPS, compute_dtype=jnp.float32):
    """One-time parameter transform (do at weight-load time, not per call).

    w: [in_dim, out_dim] (nn.Linear weight transposed); others: [out_dim].
    Folds BN(running stats) + Linear bias into (W', shift) and pads K/N only to
    the hardware minimum (multiples of 128). compute_dtype=bf16 recommended on
    v6e/v7x (bf16 MXU path, halves the dominant weight DMA).
    """
    k_dim, n = w.shape
    scale = gamma.astype(jnp.float32) * jax.lax.rsqrt(
        running_var.astype(jnp.float32) + eps)
    shift = beta.astype(jnp.float32) + (
        b.astype(jnp.float32) - running_mean.astype(jnp.float32)) * scale
    w_folded = w.astype(jnp.float32) * scale[None, :]

    k_pad = _round_up(k_dim, 128)
    n_pad = _round_up(n, 128)

    # Padded columns: zero weight + zero shift => y=0 => GELU(0)=0 (sliced off).
    w_p = jnp.pad(w_folded, ((0, k_pad - k_dim), (0, n_pad - n))).astype(compute_dtype)
    shift_p = jnp.pad(shift, (0, n_pad - n)).reshape(1, n_pad)

    return {"w": w_p, "shift": shift_p, "in_dim": k_dim, "out_dim": n,
            "compute_dtype": jnp.dtype(compute_dtype)}


def mlp_layer_forward(x, params, *, out_dtype=jnp.float32, approximate_gelu=False):
    """x: [N, in_dim] -> [N, out_dim] (eval-mode mlpLayer forward)."""
    m, k_dim = x.shape
    assert k_dim == params["in_dim"]
    w_p, shift_p = params["w"], params["shift"]
    k_pad, n_pad = w_p.shape
    out_dim = params["out_dim"]
    compute_dtype = params["compute_dtype"]
    out_dtype = jnp.dtype(out_dtype)
    f32_out = out_dtype == jnp.dtype(jnp.float32)

    x_isz = jnp.dtype(x.dtype).itemsize
    w_isz = jnp.dtype(compute_dtype).itemsize
    o_isz = out_dtype.itemsize

    # Sublane multiple for M: 16 when any bf16 tile carries the M axis.
    sub = 16 if (w_isz == 2 or o_isz == 2 or x_isz == 2) else 8

    # ---- Batch padding / row tile: prefer grid_m == 1 so W streams once. ----
    m_min = _round_up(m, sub)
    if m_min <= 1024:
        m_pad, tm = m_min, m_min
    else:
        tm = _divisor_tile(m_min, sub, 512)
        if tm >= 256:
            m_pad = m_min                      # exact divisor, zero row waste
        else:                                  # awkward (near-prime) batch
            m_pad = _round_up(m, 256)          # bounded (<256 rows) padding
            tm = 256

    # ---- Generation-aware VMEM budget (v7x: 64 MiB; v5e/v6e: 128 MiB). ----
    capacity = _vmem_capacity_bytes()
    if capacity >= 96 * 1024 * 1024:
        budget, limit_cap = 80 * 1024 * 1024, 100 * 1024 * 1024
    else:
        budget, limit_cap = 40 * 1024 * 1024, 52 * 1024 * 1024

    use_acc = not f32_out

    def vmem_need(tm_, tn_, tk_, w_bufs=2):
        return (2 * tm_ * tk_ * x_isz                 # double-buffered x tiles
                + w_bufs * tk_ * tn_ * w_isz          # W tiles
                + 2 * tm_ * tn_ * o_isz               # output tiles
                + (tm_ * tn_ * 4 if use_acc else 0)   # f32 accumulator scratch
                + 2 * 8 * tn_ * 4)                    # shift row (sublane-padded)

    # ---- Feature / contraction tiles: as large as the budget allows. ----
    tn = _divisor_tile(n_pad, 128, 1024)
    tk = _divisor_tile(k_pad, 128, 2048)
    while vmem_need(tm, tn, tk) > budget:
        if tk >= tn and tk >= tm and tk > 128:
            tk = _divisor_tile(k_pad, 128, max(128, tk // 2))
        elif tn >= tm and tn > 128:
            tn = _divisor_tile(n_pad, 128, max(128, tn // 2))
        elif tm > sub:
            tm = _divisor_tile(m_pad, sub, max(sub, tm // 2))
        else:
            break

    # Keep >= 2 (M, N) blocks when possible so v7x's two TensorCores both work.
    if (m_pad // tm) * (n_pad // tn) == 1 and n_pad >= 256:
        tn = _divisor_tile(n_pad, 128, n_pad // 2)

    grid = (m_pad // tm, n_pad // tn, k_pad // tk)
    grid_m, grid_n, grid_k = grid

    # ---- Deeper weight buffering for mem-bound shapes (DMA-issue latency). ----
    w_bufs = 2
    if grid_n * grid_k >= 3 and grid_k <= 4 and vmem_need(tm, tn, tk, 3) <= budget:
        w_bufs = 3
    if w_bufs == 3:
        w_spec = pl.BlockSpec((tk, tn), lambda i, j, k: (k, j),
                              pipeline_mode=pl.Buffered(3))
    else:
        w_spec = pl.BlockSpec((tk, tn), lambda i, j, k: (k, j))

    vmem_needed = vmem_need(tm, tn, tk, w_bufs)
    vmem_limit = int(min(limit_cap, max(vmem_needed + (16 << 20), 32 << 20)))

    # ---- Pad x only when required; no wrapper-side cast (kernel casts on VPU). ----
    if m_pad == m and k_pad == k_dim:
        x_in = x
    else:
        x_in = jnp.pad(x, ((0, m_pad - m), (0, k_pad - k_dim)))

    cost = pl.CostEstimate(
        flops=2 * m_pad * k_pad * n_pad,
        bytes_accessed=int(grid_n * m_pad * k_pad * x_isz     # x streamed per N block
                           + grid_m * k_pad * n_pad * w_isz   # W streamed per M block
                           + grid_m * n_pad * 4               # shift
                           + m_pad * n_pad * o_isz),          # output writeback
        transcendentals=m_pad * n_pad,
    )

    if f32_out:
        kernel = functools.partial(_mlp_kernel_f32out, approximate=approximate_gelu)
        scratch = []
    else:
        kernel = functools.partial(_mlp_kernel_acc, approximate=approximate_gelu)
        scratch = [pltpu.VMEM((tm, tn), jnp.float32)]

    out_p = pl.pallas_call(
        kernel,
        out_shape=jax.ShapeDtypeStruct((m_pad, n_pad), out_dtype),
        grid_spec=pltpu.PrefetchScalarGridSpec(
            num_scalar_prefetch=0,
            grid=grid,
            in_specs=[
                pl.BlockSpec((tm, tk), lambda i, j, k: (i, k)),
                w_spec,
                pl.BlockSpec((1, tn), lambda i, j, k: (0, j)),
            ],
            out_specs=pl.BlockSpec((tm, tn), lambda i, j, k: (i, j)),
            scratch_shapes=scratch,
        ),
        compiler_params=pltpu.CompilerParams(
            dimension_semantics=("parallel", "parallel", "arbitrary"),
            vmem_limit_bytes=vmem_limit,
        ),
        cost_estimate=cost,
    )(x_in, w_p, shift_p)

    return out_p[:m, :out_dim]


def reference_forward(x, w, b, gamma, beta, running_mean, running_var, eps=BN_EPS):
    y = x @ w + b
    y = (y - running_mean) / jnp.sqrt(running_var + eps) * gamma + beta
    return jax.nn.gelu(y, approximate=False)


if __name__ == "__main__":
    key = jax.random.PRNGKey(0)

    def make_params(k, in_dim, out_dim):
        k_w, k_b, k_g, k_be, k_m, k_v = jax.random.split(k, 6)
        bound = 1.0 / math.sqrt(in_dim)
        w = jax.random.uniform(k_w, (in_dim, out_dim), jnp.float32, -bound, bound)
        b = jax.random.uniform(k_b, (out_dim,), jnp.float32, -bound, bound)
        gamma = jax.random.uniform(k_g, (out_dim,), jnp.float32, 0.5, 1.5)
        beta = jax.random.uniform(k_be, (out_dim,), jnp.float32, -0.5, 0.5)
        mean = jax.random.uniform(k_m, (out_dim,), jnp.float32, -0.5, 0.5)
        var = jax.random.uniform(k_v, (out_dim,), jnp.float32, 0.5, 1.5)
        return w, b, gamma, beta, mean, var

    k0, k1, kx0, kx1 = jax.random.split(key, 4)

    # Case 1: small shapes (batch=8, in=32, out=32).
    batch, in_dim, out_dim = 8, 32, 32
    x = jax.random.normal(kx0, (batch, in_dim), dtype=jnp.float32)
    w, b, gamma, beta, mean, var = make_params(k0, in_dim, out_dim)
    ref = reference_forward(x, w, b, gamma, beta, mean, var)

    # f32 compute, f32 out (matches the PyTorch eval-mode forward).
    p_f32 = fold_mlp_params(w, b, gamma, beta, mean, var, compute_dtype=jnp.float32)
    out_f32 = jax.block_until_ready(mlp_layer_forward(x, p_f32))
    assert out_f32.shape == (batch, out_dim) and out_f32.dtype == jnp.float32
    assert jnp.allclose(out_f32, ref, atol=1e-4, rtol=1e-4), "f32 mismatch vs reference"

    # bf16 weights (v6e/v7x MXU path), f32 accumulate + f32 output.
    p_bf16 = fold_mlp_params(w, b, gamma, beta, mean, var, compute_dtype=jnp.bfloat16)
    out_bf16 = jax.block_until_ready(mlp_layer_forward(x, p_bf16))
    assert out_bf16.shape == (batch, out_dim)
    assert jnp.allclose(out_bf16, ref, atol=5e-2, rtol=5e-2), "bf16 mismatch vs reference"

    # bf16 weights + bf16 output (halved writeback; exercises the scratch kernel).
    out_bf16o = jax.block_until_ready(
        mlp_layer_forward(x, p_bf16, out_dtype=jnp.bfloat16))
    assert out_bf16o.dtype == jnp.bfloat16 and out_bf16o.shape == (batch, out_dim)
    assert jnp.allclose(out_bf16o.astype(jnp.float32), ref, atol=5e-2, rtol=5e-2), \
        "bf16-out mismatch vs reference"

    # Case 2: ragged dims (not multiples of 8/128) exercise the minimal-padding path.
    batch2, in2, out2 = 20, 160, 96
    x2 = jax.random.normal(kx1, (batch2, in2), dtype=jnp.float32)
    w2, b2, g2, be2, m2, v2 = make_params(k1, in2, out2)
    ref2 = reference_forward(x2, w2, b2, g2, be2, m2, v2)
    p2 = fold_mlp_params(w2, b2, g2, be2, m2, v2, compute_dtype=jnp.float32)
    out2_ = jax.block_until_ready(mlp_layer_forward(x2, p2))
    assert out2_.shape == (batch2, out2)
    assert jnp.allclose(out2_, ref2, atol=1e-4, rtol=1e-4), "ragged f32 mismatch"

    print("KERNEL_OK")
</pallas_src>

<mosaic_0001>
module attributes {stable_mosaic.version = 11 : i64} {
  func.func @_mlp_kernel_f32out(%arg0: i32, %arg1: i32, %arg2: i32, %arg3: memref<8x128xf32, #tpu.memory_space<vmem>>, %arg4: memref<128x128xf32, #tpu.memory_space<vmem>>, %arg5: memref<1x128xf32, #tpu.memory_space<vmem>>, %arg6: memref<8x128xf32, #tpu.memory_space<vmem>>) attributes {dimension_semantics = [#tpu.dimension_semantics<parallel>, #tpu.dimension_semantics<parallel>, #tpu.dimension_semantics<arbitrary>], iteration_bounds = array<i64: 1, 1, 1>, scalar_prefetch = 0 : i64, scratch_operands = 0 : i64, tpu.core_type = #tpu.core_type<tc>, window_params = [{transform_indices = @transform_0, window_bounds = array<i64: 8, 128>}, {transform_indices = @transform_1, window_bounds = array<i64: 128, 128>}, {transform_indices = @transform_2, window_bounds = array<i64: 1, 128>}, {transform_indices = @transform_3, window_bounds = array<i64: 8, 128>}]} {
    %c0_i32 = arith.constant 0 : i32
    %0 = arith.cmpi eq, %arg2, %c0_i32 : i32
    %1 = arith.extui %0 : i1 to i32
    %c0_i32_0 = arith.constant 0 : i32
    %2 = arith.cmpi ne, %1, %c0_i32_0 : i32
    scf.if %2 {
      %cst_10 = arith.constant 0.000000e+00 : f32
      %12 = vector.broadcast %cst_10 : f32 to vector<8x128xf32>
      %c0_11 = arith.constant 0 : index
      %c0_12 = arith.constant 0 : index
      %13 = vector.load %arg6[%c0_11, %c0_12] : memref<8x128xf32, #tpu.memory_space<vmem>>, vector<8x128xf32>
      tpu.vector_store %arg6[%c0_11, %c0_12], %12 {strides = array<i32>} : memref<8x128xf32, #tpu.memory_space<vmem>>, vector<8x128xf32>,
    } else {
    }
    %c0 = arith.constant 0 : index
    %c0_1 = arith.constant 0 : index
    %3 = vector.load %arg6[%c0, %c0_1] : memref<8x128xf32, #tpu.memory_space<vmem>>, vector<8x128xf32>
    %c0_2 = arith.constant 0 : index
    %c0_3 = arith.constant 0 : index
    %4 = vector.load %arg3[%c0_2, %c0_3] : memref<8x128xf32, #tpu.memory_space<vmem>>, vector<8x128xf32>
    %c0_4 = arith.constant 0 : index
    %c0_5 = arith.constant 0 : index
    %5 = vector.load %arg4[%c0_4, %c0_5] : memref<128x128xf32, #tpu.memory_space<vmem>>, vector<128x128xf32>
    %cst = arith.constant dense<0.000000e+00> : vector<8x128xf32>
    %6 = tpu.matmul %4, %5, %cst {dimension_numbers = #tpu.dot_dimension_numbers<[1], [0], [0], [1], [0, 0, 1, 1], [], []>} : vector<8x128xf32>, vector<128x128xf32>, vector<8x128xf32> -> vector<8x128xf32>
    %7 = arith.addf %3, %6 : vector<8x128xf32>
    %c0_6 = arith.constant 0 : index
    %c0_7 = arith.constant 0 : index
    %8 = vector.load %arg6[%c0_6, %c0_7] : memref<8x128xf32, #tpu.memory_space<vmem>>, vector<8x128xf32>
    tpu.vector_store %arg6[%c0_6, %c0_7], %7 {strides = array<i32>} : memref<8x128xf32, #tpu.memory_space<vmem>>, vector<8x128xf32>,
    %c0_i32_8 = arith.constant 0 : i32
    %9 = arith.cmpi eq, %arg2, %c0_i32_8 : i32
    %10 = arith.extui %9 : i1 to i32
    %c0_i32_9 = arith.constant 0 : i32
    %11 = arith.cmpi ne, %10, %c0_i32_9 : i32
    scf.if %11 {
      %c0_10 = arith.constant 0 : index
      %c0_11 = arith.constant 0 : index
      %12 = vector.load %arg6[%c0_10, %c0_11] : memref<8x128xf32, #tpu.memory_space<vmem>>, vector<8x128xf32>
      %c0_12 = arith.constant 0 : index
      %c0_13 = arith.constant 0 : index
      %13 = vector.load %arg5[%c0_12, %c0_13] : memref<1x128xf32, #tpu.memory_space<vmem>>, vector<1x128xf32>
      %14 = vector.broadcast %13 : vector<1x128xf32> to vector<8x128xf32>
      %15 = arith.addf %12, %14 : vector<8x128xf32>
      %cst_14 = arith.constant 5.000000e-01 : f32
      %16 = vector.broadcast %cst_14 : f32 to vector<8x128xf32>
      %17 = arith.mulf %16, %15 : vector<8x128xf32>
      %cst_15 = arith.constant 0.707106769 : f32
      %18 = vector.broadcast %cst_15 : f32 to vector<8x128xf32>
      %19 = arith.mulf %15, %18 : vector<8x128xf32>
      %20 = math.erf %19 : vector<8x128xf32>
      %cst_16 = arith.constant 1.000000e+00 : f32
      %21 = vector.broadcast %cst_16 : f32 to vector<8x128xf32>
      %22 = arith.addf %21, %20 : vector<8x128xf32>
      %23 = arith.mulf %17, %22 : vector<8x128xf32>
      %c0_17 = arith.constant 0 : index
      %c0_18 = arith.constant 0 : index
      %24 = vector.load %arg6[%c0_17, %c0_18] : memref<8x128xf32, #tpu.memory_space<vmem>>, vector<8x128xf32>
      tpu.vector_store %arg6[%c0_17, %c0_18], %23 {strides = array<i32>} : memref<8x128xf32, #tpu.memory_space<vmem>>, vector<8x128xf32>,
    } else {
    }
    return
  }
  func.func @transform_0(%arg0: i32, %arg1: i32, %arg2: i32) -> (i32, i32) {
    %c0_i32 = arith.constant 0 : i32
    return %arg0, %arg2 : i32, i32
  }
  func.func @transform_1(%arg0: i32, %arg1: i32, %arg2: i32) -> (i32, i32) {
    %c0_i32 = arith.constant 0 : i32
    return %arg2, %arg1 : i32, i32
  }
  func.func @transform_2(%arg0: i32, %arg1: i32, %arg2: i32) -> (i32, i32) {
    %c0_i32 = arith.constant 0 : i32
    %c0_i32_0 = arith.constant 0 : i32
    return %c0_i32, %arg1 : i32, i32
  }
  func.func @transform_3(%arg0: i32, %arg1: i32, %arg2: i32) -> (i32, i32) {
    %c0_i32 = arith.constant 0 : i32
    return %arg0, %arg1 : i32, i32
  }
}

</mosaic_0001>

<llo_original>
// kernel: tpu_custom_call.1
$region0: #{tpu_custom_call.1}
  #allocation0 [shape = 'u32[]', space=smem, size = 0x4, offset = 0x4, fixed_abs, tag = 'smem constant byte address 0x4 - core index']
  #allocation1 [shape = 'u32[72,128]{1,0:T(1,128)}', space=vmem, size = 0x9000, scoped, tag = 'internal scratch']
  %s0 = inlined_call_operand.hbm [shape: f32[8,128], index: 0, kind: input, shape index: {}]
  %s1 = inlined_call_operand.hbm [shape: f32[128,128], index: 1, kind: input, shape index: {}]
  %s2 = inlined_call_operand.vmem [shape: f32[1,128], index: 2, kind: input, shape index: {}]
  %s3 = inlined_call_operand.hbm [shape: f32[8,128], index: 3, kind: output, shape index: {}]
  %s4 = sld [smem:[#allocation0]]
  $region38: #{tpu_custom_call.1} parent=0
    _
  %s6 = ssub.s32 1, %s4
  %s7 = scalar_select 0, %s6, %s4
  $region1: #{tpu_custom_call.1} parent=0
    #allocation2 [shape = 'u8[4096]{0}', space=vmem, size = 0x1000, scoped, tag = 'input window, operand 0, single buffered']
    #allocation3 [shape = 's32[1]{0}', space=sflag, size = 0x4, scoped, tag = 'scoped memory for tpu_custom_call.1']
    #allocation4 [shape = 's32[1]{0}', space=sflag, size = 0x4, scoped, tag = 'scoped memory for tpu_custom_call.1']
    #allocation5 [shape = 'u8[65536]{0}', space=vmem, size = 0x10000, scoped, tag = 'input window, operand 1, single buffered']
    #allocation6 [shape = 's32[1]{0}', space=sflag, size = 0x4, scoped, tag = 'scoped memory for tpu_custom_call.1']
    #allocation7 [shape = 'u8[4096]{0}', space=vmem, size = 0x1000, scoped, tag = 'output window, operand 0, single buffered']
    %8 = vsyncpa [#allocation3], 0
    %9 = vsyncpa [#allocation6], 0
    %10 = vsyncpa [#allocation4], 0
    // Predicated region
    $region2: #{tpu_custom_call.1} parent=1 // pred_check
      _
    $region3: #{tpu_custom_call.1} parent=1 // pred_check_branch
      %12 = sbr.rel (0) target = $region5
    $region4: #{tpu_custom_call.1} parent=1 // pred_region
      %14 = vsyncadd [#allocation3], 0
      %s16 = sshll.u32 %s0, 4
      %s17 = int_to_ptr.hbm [resolvable:$true] %s16
      %s18 = sshll.u32 [#allocation2], 4
      %s19 = int_to_ptr.vmem [resolvable:$true] %s18
      %21 = dma.hbm_to_vmem [thread:$0]  %s17, 128, %s19, [#allocation3]
    $region5: #{tpu_custom_call.1} parent=1 // pred_fallthru
      _
    // Predicated region
    $region6: #{tpu_custom_call.1} parent=1 // pred_check
      _
    $region7: #{tpu_custom_call.1} parent=1 // pred_check_branch
      %23 = sbr.rel (0) target = $region9
    $region8: #{tpu_custom_call.1} parent=1 // pred_region
      %25 = vsyncadd [#allocation6], 0
      %s26 = sshll.u32 %s1, 4
      %s27 = int_to_ptr.hbm [resolvable:$true] %s26
      %s28 = sshll.u32 [#allocation5], 4
      %s29 = int_to_ptr.vmem [resolvable:$true] %s28
      %34 = dma.hbm_to_vmem [thread:$0]  %s27, 2048, %s29, [#allocation6], 128, 128, 8
    $region9: #{tpu_custom_call.1} parent=1 // pred_fallthru
      _
    // Predicated region
    $region10: #{tpu_custom_call.1} parent=1 // pred_check
      _
    $region11: #{tpu_custom_call.1} parent=1 // pred_check_branch
      %36 = sbr.rel (0) target = $region13
    $region12: #{tpu_custom_call.1} parent=1 // pred_region
      _
    $region13: #{tpu_custom_call.1} parent=1 // pred_fallthru
      _
    // Predicated region
    $region14: #{tpu_custom_call.1} parent=1 // pred_check
      _
    $region15: #{tpu_custom_call.1} parent=1 // pred_check_branch
      %38 = sbr.rel (0) target = $region17
    $region16: #{tpu_custom_call.1} parent=1 // pred_region
      %40 = dma.done [#allocation3], 128
    $region17: #{tpu_custom_call.1} parent=1 // pred_fallthru
      _
    // Predicated region
    $region18: #{tpu_custom_call.1} parent=1 // pred_check
      _
    $region19: #{tpu_custom_call.1} parent=1 // pred_check_branch
      %42 = sbr.rel (0) target = $region21
    $region20: #{tpu_custom_call.1} parent=1 // pred_region
      %44 = dma.done [#allocation6], 2048
    $region21: #{tpu_custom_call.1} parent=1 // pred_fallthru
      _
    %p45 = scmp.eq.s32.totalorder 0, 0
    // Predicated region
    $region22: #{tpu_custom_call.1} parent=1 // pred_check
      %p46 = pneg %p45
    $region23: #{tpu_custom_call.1} parent=1 // pred_check_branch
      %48 = sbr.rel (%p46) target = $region25
    $region24: #{tpu_custom_call.1} parent=1 // pred_region
      %49 = vst [vmem:[#allocation7] sm:$0xff] 0.0
    $region25: #{tpu_custom_call.1} parent=1 // pred_fallthru
      _
    %v50 = vld [vmem:[#allocation7] sm:$0xff]
    %v51 = vld [vmem:[#allocation2] sm:$0xff]
    %v52 = vld [vmem:[#allocation5] sm:$0xff]
    %v53 = vld [vmem:[#allocation5 + $0x8] sm:$0xff]
    %v54 = vld [vmem:[#allocation5 + $0x10] sm:$0xff]
    %v55 = vld [vmem:[#allocation5 + $0x18] sm:$0xff]
    %v56 = vld [vmem:[#allocation5 + $0x20] sm:$0xff]
    %v57 = vld [vmem:[#allocation5 + $0x28] sm:$0xff]
    %v58 = vld [vmem:[#allocation5 + $0x30] sm:$0xff]
    %v59 = vld [vmem:[#allocation5 + $0x38] sm:$0xff]
    %v60 = vld [vmem:[#allocation5 + $0x40] sm:$0xff]
    %v61 = vld [vmem:[#allocation5 + $0x48] sm:$0xff]
    %v62 = vld [vmem:[#allocation5 + $0x50] sm:$0xff]
    %v63 = vld [vmem:[#allocation5 + $0x58] sm:$0xff]
    %v64 = vld [vmem:[#allocation5 + $0x60] sm:$0xff]
    %v65 = vld [vmem:[#allocation5 + $0x68] sm:$0xff]
    %v66 = vld [vmem:[#allocation5 + $0x70] sm:$0xff]
    %v67 = vld [vmem:[#allocation5 + $0x78] sm:$0xff]
    %68 = vmatpush.msra.mxu0 %v67
    %69 = vmatpush.msra.mxu0 %v66
    %70 = vmatpush.msra.mxu0 %v65
    %71 = vmatpush.msra.mxu0 %v64
    %72 = vmatpush.msra.mxu0 %v63
    %73 = vmatpush.msra.mxu0 %v62
    %74 = vmatpush.msra.mxu0 %v61
    %75 = vmatpush.msra.mxu0 %v60
    %76 = vmatpush.msra.mxu0 %v59
    %77 = vmatpush.msra.mxu0 %v58
    %78 = vmatpush.msra.mxu0 %v57
    %79 = vmatpush.msra.mxu0 %v56
    %80 = vmatpush.msra.mxu0 %v55
    %81 = vmatpush.msra.mxu0 %v54
    %82 = vmatpush.msra.mxu0 %v53
    %83 = vmatpush.msra.mxu0 %v52
    %84 = vmatmul.f32.gmra.mxu0 %v51
    %v85 = vpop.f32.mrf.mxu0
    %v86 = vadd.f32 0.0, %v85
    %87 = vdwg.mxu0
    %v88 = vadd.f32 %v50, %v86
    %89 = vst [vmem:[#allocation7] sm:$0xff] %v88
    // Predicated region
    $region26: #{tpu_custom_call.1} parent=1 // pred_check
      %p90 = pneg %p45
    $region27: #{tpu_custom_call.1} parent=1 // pred_check_branch
      %92 = sbr.rel (%p90) target = $region29
    $region28: #{tpu_custom_call.1} parent=1 // pred_region
      %v93 = vld [vmem:[#allocation7] sm:$0xff]
      %v94 = vld [vmem:[%s2] sm:$0x1]
      %v96 = vperm.slane %v94, 0
      %v98 = vadd.f32 %v93, %v96
      %v99 = vmul.f32 %v98, 0.5
      %v100 = vmul.f32 %v98, 0.70710677
      %v101 = vmul.f32 %v100, %v100
      %v102 = vmin.f32 16.0, %v101
      %v103 = vmul.f32 %v102, 2.1237322e-06
      %v104 = vadd.f32 %v103, 0.00028619796
      %v105 = vmul.f32 %v102, %v104
      %v106 = vadd.f32 %v105, 0.0036580483
      %v107 = vmul.f32 %v102, %v106
      %v108 = vadd.f32 %v107, 0.05243302
      %v109 = vmul.f32 %v102, %v108
      %v110 = vadd.f32 %v109, 0.18741608
      %v111 = vmul.f32 %v102, %v110
      %v112 = vadd.f32 %v111, 1.1283791
      %v113 = vmul.f32 %v100, %v112
      %v114 = vmul.f32 %v102, 3.8918573e-05
      %v115 = vadd.f32 %v114, 0.001143296
      %v116 = vmul.f32 %v102, %v115
      %v117 = vadd.f32 %v116, 0.014752088
      %v118 = vmul.f32 %v102, %v117
      %v119 = vadd.f32 %v118, 0.112945676
      %v120 = vmul.f32 %v102, %v119
      %v121 = vadd.f32 %v120, 0.4994258
      %v122 = vmul.f32 %v102, %v121
      %v123 = vadd.f32 %v122, 1.0
      %v124 = vrcp.pop %v123
      %v125 = vmul.f32 %v123, %v124
      %v126 = vsub.f32 1.0, %v125
      %v127 = vmul.f32 %v124, %v126
      %v128 = vadd.f32 %v124, %v127
      %vm129 = vweird.f32 %v123
      %vm130 = vweird.f32 %v124
      %vm131 = vmor %vm129, %vm130
      %v132 = vsel %vm131, %v124, %v128
      %v133 = vand.u32 2147483647, %v123
      %vm134 = vcmp.eq.f32.partialorder %v133, 8.507059e+37
      %v135 = vand.u32 %v123, 2147483648
      %v136 = vor.u32 1.1754944e-38, %v135
      %v137 = vsel %vm134, %v136, %v132
      %v138 = vmul.f32 %v113, %v137
      %v139 = vmin.f32 %v138, 1.0
      %v140 = vmax.f32 %v139, -1.0
      %v141 = vadd.f32 %v140, 1.0
      %v142 = vmul.f32 %v99, %v141
      %143 = vst [vmem:[#allocation7] sm:$0xff] %v142
    $region29: #{tpu_custom_call.1} parent=1 // pred_fallthru
      _
    // Predicated region
    $region30: #{tpu_custom_call.1} parent=1 // pred_check
      _
    $region31: #{tpu_custom_call.1} parent=1 // pred_check_branch
      %145 = sbr.rel (0) target = $region33
    $region32: #{tpu_custom_call.1} parent=1 // pred_region
      %147 = vsyncadd [#allocation4], 0
      %s149 = sshll.u32 [#allocation7], 4
      %s150 = int_to_ptr.vmem [resolvable:$true] %s149
      %s151 = sshll.u32 %s3, 4
      %s152 = int_to_ptr.hbm [resolvable:$true] %s151
      %154 = dma.vmem_to_hbm [thread:$0]  %s150, 128, %s152, [#allocation4]
    $region33: #{tpu_custom_call.1} parent=1 // pred_fallthru
      _
    // Predicated region
    $region34: #{tpu_custom_call.1} parent=1 // pred_check
      _
    $region35: #{tpu_custom_call.1} parent=1 // pred_check_branch
      %156 = sbr.rel (0) target = $region37
    $region36: #{tpu_custom_call.1} parent=1 // pred_region
      %158 = dma.done [#allocation4], 128
    $region37: #{tpu_custom_call.1} parent=1 // pred_fallthru
      _
    %159 = vsyncpa [#allocation3], 1
    %160 = vsyncpa [#allocation6], 1
    %161 = vsyncpa [#allocation4], 1

</llo_original>
